<compile_context>
chip_gen: v5e
topology: v5e:2x2
jax: 0.10.0
libtpu: 0.0.40
codegen_flags: <defaults>
</compile_context>

<pallas_src>
import jax
import jax.numpy as jnp
from jax.experimental import pallas as pl
from jax.experimental.pallas import tpu as pltpu


def _round_up(x: int, m: int) -> int:
    return ((x + m - 1) // m) * m


def _sublane_for(dtype) -> int:
    # f32: (8,128), bf16/f16: (16,128), int8/fp8: (32,128)
    return {4: 8, 2: 16, 1: 32}.get(jnp.dtype(dtype).itemsize, 8)


def _bat_correct_kernel(params_ref, stored_ref, u_ref, out_ref):
    capacity = params_ref[0]
    low = params_ref[1]
    stored = stored_ref[...]
    u = u_ref[...]
    cond = (stored >= capacity) | (stored <= low)
    # Scalar zero (in u's dtype) -> no broadcast zeros tile materialized.
    out_ref[...] = jnp.where(cond, jnp.zeros((), dtype=u.dtype), u)


def _lane_dense_shape(B: int, F: int):
    """Free (bitcast) reshape target for narrow/ragged feature dims, or None."""
    if F >= 512 and F % 128 == 0:
        return None  # already lane-dense enough
    n = B * F
    for w in (4096, 2048, 1024, 512, 256, 128):
        if n % w == 0:
            return (n // w, w)
    return None


def bat_correct(stored: jax.Array, u_bat: jax.Array, capacity: float,
                *, donate_u_bat: bool = False) -> jax.Array:
    assert stored.ndim == 2
    assert u_bat.ndim == 2
    assert stored.shape == u_bat.shape

    B, F = stored.shape
    assert B > 0 and F > 0
    out_dtype = u_bat.dtype
    stored_isz = jnp.dtype(stored.dtype).itemsize
    out_isz = jnp.dtype(out_dtype).itemsize

    # Lane-dense repack (free reshape of contiguous row-major data) for narrow
    # or badly ragged feature dims; outputs are reshaped back at the end.
    repack = _lane_dense_shape(B, F)
    if repack is not None:
        R, C = repack
        stored_2d = stored.reshape(R, C)
        u_2d = u_bat.reshape(R, C)
    else:
        R, C = B, F
        stored_2d, u_2d = stored, u_bat

    # Sublane multiple must satisfy the most restrictive of BOTH dtypes.
    sublane = max(_sublane_for(stored.dtype), _sublane_for(out_dtype))
    lane = 128

    # Lane-dense block columns: whole (cdiv-padded) C, capped at 4096 lanes.
    bc = min(_round_up(C, lane), 4096)

    # Block rows sized so each block is ~4 MiB for the widest array: 3 arrays
    # x 2 pipeline buffers ~= 24 MiB VMEM, safe on v5e/v6e (128 MiB) and under
    # v7x's 64 MiB physical budget.
    target_block_bytes = 4 * 1024 * 1024
    max_isz = max(stored_isz, out_isz)
    br = max(sublane, (target_block_bytes // (bc * max_isz)) // sublane * sublane)
    br = min(br, _round_up(R, sublane))

    # Guarantee >= 2 grid blocks when possible so both v7x TensorCores (and
    # their DMA paths) get work.  Row split preferred, column split fallback.
    if pl.cdiv(R, br) * pl.cdiv(C, bc) < 2:
        if R > sublane:
            br = _round_up(pl.cdiv(R, 2), sublane)
        elif C > lane:
            bc = _round_up(pl.cdiv(C, 2), lane)

    grid = (pl.cdiv(R, br), pl.cdiv(C, bc))
    tile_spec = pl.BlockSpec((br, bc), lambda i, j: (i, j))
    smem_spec = pl.BlockSpec(memory_space=pltpu.MemorySpace.SMEM)

    # Scoped VMEM: exact double-buffered footprint + headroom (>= 32 MiB so the
    # v5e 16 MiB default never rejects the blocks, <= 64 MiB for v7x).
    block_bytes = br * bc * (stored_isz + 2 * out_isz)
    vmem_limit = max(32 * 1024 * 1024,
                     min(64 * 1024 * 1024, 2 * block_bytes + 8 * 1024 * 1024))

    # Runtime scalars (no recompile when capacity changes).
    params = jnp.array([float(capacity), float(capacity) * 0.2], dtype=jnp.float32)

    kwargs = {}
    if donate_u_bat:
        # Write in place when the caller donates u_bat (input 2 -> output 0).
        kwargs["input_output_aliases"] = {2: 0}

    out = pl.pallas_call(
        _bat_correct_kernel,
        out_shape=jax.ShapeDtypeStruct((R, C), out_dtype),
        grid=grid,
        in_specs=[smem_spec, tile_spec, tile_spec],
        out_specs=tile_spec,
        compiler_params=pltpu.CompilerParams(
            dimension_semantics=("parallel", "parallel"),
            vmem_limit_bytes=vmem_limit,
        ),
        **kwargs,
    )(params, stored_2d, u_2d)

    if repack is not None:
        out = out.reshape(B, F)
    return out


def bat_correct_ref(stored, u_bat, capacity):
    cond = (stored >= capacity) | (stored <= capacity * 0.2)
    return jnp.where(cond, jnp.zeros_like(u_bat), u_bat)


if __name__ == "__main__":
    key = jax.random.PRNGKey(0)
    capacity = 10.0
    k1, k2, k3, k4, k5, k6 = jax.random.split(key, 6)

    # Case 1: aligned shape — exercises the lane-dense repack path.
    B, F = 16, 256
    stored = jax.random.uniform(k1, (B, F), jnp.float32, minval=0.0, maxval=12.0)
    u_bat = jax.random.normal(k2, (B, F), jnp.float32)
    out = bat_correct(stored, u_bat, capacity)
    jax.block_until_ready(out)
    ref = bat_correct_ref(stored, u_bat, capacity)
    assert out.shape == u_bat.shape and out.dtype == u_bat.dtype
    assert bool(jnp.all(out == ref))

    # Case 2: ragged shape — exercises the cdiv grid / masked edge-block path
    # (no explicit padding or output slice anymore).
    B2, F2 = 50, 200
    stored2 = jax.random.uniform(k3, (B2, F2), jnp.float32, minval=0.0, maxval=12.0)
    u_bat2 = jax.random.normal(k4, (B2, F2), jnp.float32)
    out2 = bat_correct(stored2, u_bat2, capacity)
    jax.block_until_ready(out2)
    ref2 = bat_correct_ref(stored2, u_bat2, capacity)
    assert out2.shape == u_bat2.shape and out2.dtype == u_bat2.dtype
    assert bool(jnp.all(out2 == ref2))

    # Case 3: mixed dtypes (f32 stored, bf16 control) — exercises the
    # both-dtypes sublane derivation.
    B3, F3 = 32, 384
    stored3 = jax.random.uniform(k5, (B3, F3), jnp.float32, minval=0.0, maxval=12.0)
    u_bat3 = jax.random.normal(k6, (B3, F3), jnp.float32).astype(jnp.bfloat16)
    out3 = bat_correct(stored3, u_bat3, capacity)
    jax.block_until_ready(out3)
    ref3 = bat_correct_ref(stored3, u_bat3, capacity)
    assert out3.shape == u_bat3.shape and out3.dtype == u_bat3.dtype
    assert bool(jnp.all(out3 == ref3))

    print("KERNEL_OK")
</pallas_src>

<mosaic_0001>
module attributes {stable_mosaic.version = 11 : i64} {
  func.func @_bat_correct_kernel(%arg0: i32, %arg1: i32, %arg2: memref<2xf32, #tpu.memory_space<smem>>, %arg3: memref<8x2048xf32, #tpu.memory_space<vmem>>, %arg4: memref<8x2048xf32, #tpu.memory_space<vmem>>, %arg5: memref<8x2048xf32, #tpu.memory_space<vmem>>) attributes {dimension_semantics = [#tpu.dimension_semantics<parallel>, #tpu.dimension_semantics<parallel>], iteration_bounds = array<i64: 1, 2>, scalar_prefetch = 0 : i64, scratch_operands = 0 : i64, tpu.core_type = #tpu.core_type<tc>, window_params = [{transform_indices = @transform_0, window_bounds = array<i64: 2>}, {transform_indices = @transform_1, window_bounds = array<i64: 8, 2048>}, {transform_indices = @transform_2, window_bounds = array<i64: 8, 2048>}, {transform_indices = @transform_3, window_bounds = array<i64: 8, 2048>}]} {
    %c0 = arith.constant 0 : index
    %0 = memref.load %arg2[%c0] : memref<2xf32, #tpu.memory_space<smem>>
    %c1 = arith.constant 1 : index
    %1 = memref.load %arg2[%c1] : memref<2xf32, #tpu.memory_space<smem>>
    %c0_0 = arith.constant 0 : index
    %c0_1 = arith.constant 0 : index
    %2 = vector.load %arg3[%c0_0, %c0_1] : memref<8x2048xf32, #tpu.memory_space<vmem>>, vector<8x2048xf32>
    %c0_2 = arith.constant 0 : index
    %c0_3 = arith.constant 0 : index
    %3 = vector.load %arg4[%c0_2, %c0_3] : memref<8x2048xf32, #tpu.memory_space<vmem>>, vector<8x2048xf32>
    %4 = vector.broadcast %0 : f32 to vector<8x2048xf32>
    %5 = arith.cmpf oge, %2, %4 : vector<8x2048xf32>
    %6 = vector.broadcast %1 : f32 to vector<8x2048xf32>
    %7 = arith.cmpf ole, %2, %6 : vector<8x2048xf32>
    %8 = arith.ori %5, %7 : vector<8x2048xi1>
    %cst = arith.constant 0.000000e+00 : f32
    %9 = vector.broadcast %cst : f32 to vector<8x2048xf32>
    %10 = arith.select %8, %9, %3 : vector<8x2048xi1>, vector<8x2048xf32>
    %c0_4 = arith.constant 0 : index
    %c0_5 = arith.constant 0 : index
    %11 = vector.load %arg5[%c0_4, %c0_5] : memref<8x2048xf32, #tpu.memory_space<vmem>>, vector<8x2048xf32>
    tpu.vector_store %arg5[%c0_4, %c0_5], %10 {strides = array<i32>} : memref<8x2048xf32, #tpu.memory_space<vmem>>, vector<8x2048xf32>,
    return
  }
  func.func @transform_0(%arg0: i32, %arg1: i32) -> i32 {
    %c0_i32 = arith.constant 0 : i32
    %c0_i32_0 = arith.constant 0 : i32
    return %c0_i32 : i32
  }
  func.func @transform_1(%arg0: i32, %arg1: i32) -> (i32, i32) {
    %c0_i32 = arith.constant 0 : i32
    return %arg0, %arg1 : i32, i32
  }
  func.func @transform_2(%arg0: i32, %arg1: i32) -> (i32, i32) {
    %c0_i32 = arith.constant 0 : i32
    return %arg0, %arg1 : i32, i32
  }
  func.func @transform_3(%arg0: i32, %arg1: i32) -> (i32, i32) {
    %c0_i32 = arith.constant 0 : i32
    return %arg0, %arg1 : i32, i32
  }
}

</mosaic_0001>

<llo_original>
// kernel: tpu_custom_call.1
$region0: #{tpu_custom_call.1}
  #allocation0 [shape = 'u32[]', space=smem, size = 0x4, offset = 0x4, fixed_abs, tag = 'smem constant byte address 0x4 - core index']
  #allocation1 [shape = 'u32[72,128]{1,0:T(1,128)}', space=vmem, size = 0x9000, scoped, tag = 'internal scratch']
  %s0 = inlined_call_operand.hbm [shape: f32[2], index: 0, kind: input, shape index: {}]
  %s1 = inlined_call_operand.hbm [shape: f32[1,4096], index: 1, kind: input, shape index: {}]
  %s2 = inlined_call_operand.hbm [shape: f32[1,4096], index: 2, kind: input, shape index: {}]
  %s3 = inlined_call_operand.hbm [shape: f32[1,4096], index: 3, kind: output, shape index: {}]
  %s4 = sld [smem:[#allocation0]]
  $region57: #{tpu_custom_call.1} parent=0
    _
  %s6 = ssub.s32 1, %s4
  %s7 = scalar_select 0, %s6, %s4
  $region1: #{tpu_custom_call.1} parent=0
    #allocation2 [shape = 'u8[512]{0}', space=smem, size = 0x200, scoped, tag = 'input window, operand 0, single buffered']
    #allocation3 [shape = 's32[2]{0}', space=sflag, size = 0x8, scoped, tag = 'scoped memory for tpu_custom_call.1']
    #allocation4 [shape = 's32[2]{0}', space=sflag, size = 0x8, scoped, tag = 'scoped memory for tpu_custom_call.1']
    #allocation5 [shape = 's32[2]{0}', space=sflag, size = 0x8, scoped, tag = 'scoped memory for tpu_custom_call.1']
    #allocation6 [shape = 'u8[131072]{0}', space=vmem, size = 0x20000, scoped, tag = 'input window, operand 1']
    #allocation7 [shape = 'u8[131072]{0}', space=vmem, size = 0x20000, scoped, tag = 'input window, operand 2']
    #allocation8 [shape = 's32[2]{0}', space=sflag, size = 0x8, scoped, tag = 'scoped memory for tpu_custom_call.1']
    #allocation9 [shape = 'u8[131072]{0}', space=vmem, size = 0x20000, scoped, tag = 'output window, operand 0']
    %8 = vsyncpa [#allocation5], 0
    %9 = vsyncpa [#allocation3], 0
    %s10 = scalar_lea.sflag [#allocation3], 1
    %11 = vsyncpa %s10, 0
    %12 = vsyncpa [#allocation8], 0
    %s13 = scalar_lea.sflag [#allocation8], 1
    %14 = vsyncpa %s13, 0
    %15 = vsyncpa [#allocation4], 0
    %s16 = scalar_lea.sflag [#allocation4], 1
    %17 = vsyncpa %s16, 0
    loop: start=0, step=1, limit=4
    $region2: #{tpu_custom_call.1} parent=1 // loop_pre_header
      _
    $region3: #{tpu_custom_call.1} parent=1 // loop_header
      %s19 = sphi 0, %s23
      %p20 = scmp.ge.s32.totalorder %s19, 4
      %s26 = sphi 0, %s38
      %s27 = sphi 0, %s34
      %s28 = sphi 0, %s26
      %s29 = sphi 0, %s27
      %s30 = sphi 0, %s28
      %s31 = sphi 0, %s29
      %s39 = sphi 0, %s39
      %s41 = sphi 0, %s39
      %s42 = sphi 0, %s41
      %s56 = sphi 0, %s42
      %s64 = sphi 0, %s66
      %s67 = sphi 0, %s64
      %s68 = sphi 0, %s67
      %s84 = sphi 0, %s68
      %s92 = sphi 0, %s94
      %s95 = sphi 0, %s92
      %s96 = sphi 0, %s95
      %s112 = sphi 0, %s96
      %s120 = sphi 0, %s122
      %s123 = sphi 0, %s120
      %s124 = sphi 0, %s123
      %s140 = sphi 0, %s124
    $region4: #{tpu_custom_call.1} parent=1 // loop_header_branch
      %22 = sbr.rel (%p20) target = $region8
    $region5: #{tpu_custom_call.1} parent=1 // loop_body
      %s24 = ssub.s32 %s19, 1
      %s25 = ssub.s32 %s19, 2
      %s32 = sadd.s32 1, %s27
      %p33 = scmp.ge.s32.totalorder %s32, 2
      %s34 = scalar_select %p33, 0, %s32
      %s35 = sadd.s32 1, %s26
      %s36 = scalar_select %p33, %s35, %s26
      %p37 = scmp.ge.s32.totalorder %s36, 1
      %s38 = scalar_select %p37, 0, %s36
      %s40 = sadd.s32 %s39, 1
      %p43 = scmp.eq.s32.totalorder %s19, 1
      %p44 = scmp.ne.s32.totalorder %s39, %s41
      %p45 = scmp.eq.s32.totalorder %s19, 0
      %p46 = por %p44, %p45
      %p47 = scmp.ne.s32.totalorder %s39, %s41
      %p48 = scmp.eq.s32.totalorder %s24, 1
      %p49 = por %p47, %p48
      %p50 = scmp.ne.s32.totalorder %s41, %s42
      %p51 = scmp.eq.s32.totalorder %s24, 0
      %p52 = por %p50, %p51
      %p53 = scmp.ne.s32.totalorder %s41, %s42
      %p54 = scmp.eq.s32.totalorder %s25, 1
      %p55 = por %p53, %p54
      %p57 = scmp.ne.s32.totalorder %s42, %s56
      %p58 = scmp.eq.s32.totalorder %s25, 0
      %p59 = por %p57, %p58
      %s60 = ssub.s32 %s26, %s38
      %s61 = ssub.s32 %s27, %s34
      %s62 = sor.u32 %s60, %s61
      %p63 = scmp.eq.s32.totalorder %s62, 0
      %s65 = sadd.s32 %s64, 1
      %s66 = scalar_select %p63, %s64, %s65
      %p69 = pneg %p63
      %p70 = scmp.eq.s32.totalorder %s19, 1
      %p71 = por %p69, %p70
      %p72 = scmp.ne.s32.totalorder %s64, %s67
      %p73 = scmp.eq.s32.totalorder %s19, 0
      %p74 = por %p72, %p73
      %p75 = scmp.ne.s32.totalorder %s64, %s67
      %p76 = scmp.eq.s32.totalorder %s24, 1
      %p77 = por %p75, %p76
      %p78 = scmp.ne.s32.totalorder %s67, %s68
      %p79 = scmp.eq.s32.totalorder %s24, 0
      %p80 = por %p78, %p79
      %p81 = scmp.ne.s32.totalorder %s67, %s68
      %p82 = scmp.eq.s32.totalorder %s25, 1
      %p83 = por %p81, %p82
      %p85 = scmp.ne.s32.totalorder %s68, %s84
      %p86 = scmp.eq.s32.totalorder %s25, 0
      %p87 = por %p85, %p86
      %s88 = ssub.s32 %s26, %s38
      %s89 = ssub.s32 %s27, %s34
      %s90 = sor.u32 %s88, %s89
      %p91 = scmp.eq.s32.totalorder %s90, 0
      %s93 = sadd.s32 %s92, 1
      %s94 = scalar_select %p91, %s92, %s93
      %p97 = pneg %p91
      %p98 = scmp.eq.s32.totalorder %s19, 1
      %p99 = por %p97, %p98
      %p100 = scmp.ne.s32.totalorder %s92, %s95
      %p101 = scmp.eq.s32.totalorder %s19, 0
      %p102 = por %p100, %p101
      %p103 = scmp.ne.s32.totalorder %s92, %s95
      %p104 = scmp.eq.s32.totalorder %s24, 1
      %p105 = por %p103, %p104
      %p106 = scmp.ne.s32.totalorder %s95, %s96
      %p107 = scmp.eq.s32.totalorder %s24, 0
      %p108 = por %p106, %p107
      %p109 = scmp.ne.s32.totalorder %s95, %s96
      %p110 = scmp.eq.s32.totalorder %s25, 1
      %p111 = por %p109, %p110
      %p113 = scmp.ne.s32.totalorder %s96, %s112
      %p114 = scmp.eq.s32.totalorder %s25, 0
      %p115 = por %p113, %p114
      %s116 = ssub.s32 %s26, %s38
      %s117 = ssub.s32 %s27, %s34
      %s118 = sor.u32 %s116, %s117
      %p119 = scmp.eq.s32.totalorder %s118, 0
      %s121 = sadd.s32 %s120, 1
      %s122 = scalar_select %p119, %s120, %s121
      %p125 = pneg %p119
      %p126 = scmp.eq.s32.totalorder %s19, 1
      %p127 = por %p125, %p126
      %p128 = scmp.ne.s32.totalorder %s120, %s123
      %p129 = scmp.eq.s32.totalorder %s19, 0
      %p130 = por %p128, %p129
      %p131 = scmp.ne.s32.totalorder %s120, %s123
      %p132 = scmp.eq.s32.totalorder %s24, 1
      %p133 = por %p131, %p132
      %p134 = scmp.ne.s32.totalorder %s123, %s124
      %p135 = scmp.eq.s32.totalorder %s24, 0
      %p136 = por %p134, %p135
      %p137 = scmp.ne.s32.totalorder %s123, %s124
      %p138 = scmp.eq.s32.totalorder %s25, 1
      %p139 = por %p137, %p138
      %p141 = scmp.ne.s32.totalorder %s124, %s140
      %p142 = scmp.eq.s32.totalorder %s25, 0
      %p143 = por %p141, %p142
      %p144 = scmp.le.s32.totalorder 1, %s19
      %p145 = scmp.lt.s32.totalorder %s19, 3
      %p146 = pnand %p144, %p145
      %p147 = pneg %p146
      // Predicated region
      $region9: #{tpu_custom_call.1} parent=5 // pred_check
        _
      $region10: #{tpu_custom_call.1} parent=5 // pred_check_branch
        %149 = sbr.rel (%p146) target = $region12
      $region11: #{tpu_custom_call.1} parent=5 // pred_region
        %s150 = ssub.s32 %s19, 1
        // Predicated region
        $region13: #{tpu_custom_call.1} parent=11 // pred_check
          %p151 = pneg %p52
        $region14: #{tpu_custom_call.1} parent=11 // pred_check_branch
          %153 = sbr.rel (%p151) target = $region16
        $region15: #{tpu_custom_call.1} parent=11 // pred_region
          %155 = vsyncadd [#allocation5], 0
          %s157 = sshll.u32 %s0, 4
          %s158 = int_to_ptr.hbm [resolvable:$true] %s157
          %160 = dma.hbm_to_smem %s158, 16, [#allocation2], [#allocation5]
        $region16: #{tpu_custom_call.1} parent=11 // pred_fallthru
          _
      $region12: #{tpu_custom_call.1} parent=5 // pred_fallthru
        _
      %p161 = scmp.lt.s32.totalorder %s19, 2
      // Predicated region
      $region17: #{tpu_custom_call.1} parent=5 // pred_check
        %p162 = pneg %p161
      $region18: #{tpu_custom_call.1} parent=5 // pred_check_branch
        %164 = sbr.rel (%p162) target = $region20
      $region19: #{tpu_custom_call.1} parent=5 // pred_region
        // Predicated region
        $region21: #{tpu_custom_call.1} parent=19 // pred_check
          %p165 = pneg %p74
        $region22: #{tpu_custom_call.1} parent=19 // pred_check_branch
          %167 = sbr.rel (%p165) target = $region24
        $region23: #{tpu_custom_call.1} parent=19 // pred_region
          %s168 = sand.u32 %s64, 1
          %s169 = scalar_lea.sflag [#allocation3], %s168
          %s170 = sand.u32 %s64, 1
          %s171 = smul.addr %s170, 128
          %s172 = scalar_lea.vmem [#allocation6], %s171
          %s173 = smul.u32 8, %s26
          %s174 = smul.u32 16, %s27
          %s175 = ssub.s32 1, %s173
          %s176 = smul.u32 %s175, 16
          %s177 = ssub.s32 128, %s176
          %s178 = sshll.u32 %s177, 4
          %179 = vsyncadd %s169, %s178
          %p180 = scmp.ne.s32.totalorder 0, %s176
          %s181 = smul.addr %s173, 32
          %s182 = sadd.s32 %s174, %s181
          %s183 = scalar_lea.hbm %s1, %s182
          %s184 = smul.u32 16, %s175
          %s185 = sshll.u32 %s183, 4
          %s186 = int_to_ptr.hbm [resolvable:$true] %s185
          %s187 = sshll.u32 %s172, 4
          %s188 = int_to_ptr.vmem [resolvable:$true] %s187
          %s189 = sshll.u32 %s184, 4
          %193 = dma.hbm_to_vmem [thread:$0]  (%p180), %s186, %s189, %s188, %s169, 512, 256, 16
        $region24: #{tpu_custom_call.1} parent=19 // pred_fallthru
          _
        // Predicated region
        $region25: #{tpu_custom_call.1} parent=19 // pred_check
          %p194 = pneg %p102
        $region26: #{tpu_custom_call.1} parent=19 // pred_check_branch
          %196 = sbr.rel (%p194) target = $region28
        $region27: #{tpu_custom_call.1} parent=19 // pred_region
          %s197 = sand.u32 %s92, 1
          %s198 = scalar_lea.sflag [#allocation8], %s197
          %s199 = sand.u32 %s92, 1
          %s200 = smul.addr %s199, 128
          %s201 = scalar_lea.vmem [#allocation7], %s200
          %s202 = smul.u32 8, %s26
          %s203 = smul.u32 16, %s27
          %s204 = ssub.s32 1, %s202
          %s205 = smul.u32 %s204, 16
          %s206 = ssub.s32 128, %s205
          %s207 = sshll.u32 %s206, 4
          %208 = vsyncadd %s198, %s207
          %p209 = scmp.ne.s32.totalorder 0, %s205
          %s210 = smul.addr %s202, 32
          %s211 = sadd.s32 %s203, %s210
          %s212 = scalar_lea.hbm %s2, %s211
          %s213 = smul.u32 16, %s204
          %s214 = sshll.u32 %s212, 4
          %s215 = int_to_ptr.hbm [resolvable:$true] %s214
          %s216 = sshll.u32 %s201, 4
          %s217 = int_to_ptr.vmem [resolvable:$true] %s216
          %s218 = sshll.u32 %s213, 4
          %222 = dma.hbm_to_vmem [thread:$0]  (%p209), %s215, %s218, %s217, %s198, 512, 256, 16
        $region28: #{tpu_custom_call.1} parent=19 // pred_fallthru
          _
      $region20: #{tpu_custom_call.1} parent=5 // pred_fallthru
        _
      %p223 = scmp.le.s32.totalorder 1, %s19
      %p224 = scmp.lt.s32.totalorder %s19, 3
      %p225 = pnand %p223, %p224
      %p226 = pneg %p225
      // Predicated region
      $region29: #{tpu_custom_call.1} parent=5 // pred_check
        _
      $region30: #{tpu_custom_call.1} parent=5 // pred_check_branch
        %228 = sbr.rel (%p225) target = $region32
      $region31: #{tpu_custom_call.1} parent=5 // pred_region
        %s229 = ssub.s32 %s19, 1
        // Predicated region
        $region33: #{tpu_custom_call.1} parent=31 // pred_check
          %p230 = pneg %p52
        $region34: #{tpu_custom_call.1} parent=31 // pred_check_branch
          %232 = sbr.rel (%p230) target = $region36
        $region35: #{tpu_custom_call.1} parent=31 // pred_region
          %234 = dma.done [#allocation5], 16
        $region36: #{tpu_custom_call.1} parent=31 // pred_fallthru
          _
        %s235 = sand.u32 %s67, 1
        %s236 = scalar_lea.sflag [#allocation3], %s235
        %s237 = sand.u32 %s67, 1
        %s238 = smul.addr %s237, 128
        %s239 = scalar_lea.vmem [#allocation6], %s238
        // Predicated region
        $region37: #{tpu_custom_call.1} parent=31 // pred_check
          %p240 = pneg %p80
        $region38: #{tpu_custom_call.1} parent=31 // pred_check_branch
          %242 = sbr.rel (%p240) target = $region40
        $region39: #{tpu_custom_call.1} parent=31 // pred_region
          %244 = dma.done %s236, 2048
        $region40: #{tpu_custom_call.1} parent=31 // pred_fallthru
          _
        %s245 = sand.u32 %s95, 1
        %s246 = scalar_lea.sflag [#allocation8], %s245
        %s247 = sand.u32 %s95, 1
        %s248 = smul.addr %s247, 128
        %s249 = scalar_lea.vmem [#allocation7], %s248
        // Predicated region
        $region41: #{tpu_custom_call.1} parent=31 // pred_check
          %p250 = pneg %p108
        $region42: #{tpu_custom_call.1} parent=31 // pred_check_branch
          %252 = sbr.rel (%p250) target = $region44
        $region43: #{tpu_custom_call.1} parent=31 // pred_region
          %254 = dma.done %s246, 2048
        $region44: #{tpu_custom_call.1} parent=31 // pred_fallthru
          _
        %255 = sfence
        %p256 = pneg %p52
        %p257 = pneg %p49
        %s258 = sand.u32 %s67, 1
        %s259 = scalar_lea.sflag [#allocation3], %s258
        %s260 = sand.u32 %s67, 1
        %s261 = smul.addr %s260, 128
        %s262 = scalar_lea.vmem [#allocation6], %s261
        %p263 = pneg %p80
        %p264 = pneg %p77
        %s265 = sand.u32 %s95, 1
        %s266 = scalar_lea.sflag [#allocation8], %s265
        %s267 = sand.u32 %s95, 1
        %s268 = smul.addr %s267, 128
        %s269 = scalar_lea.vmem [#allocation7], %s268
        %p270 = pneg %p108
        %p271 = pneg %p105
        %p272 = pneg %p136
        %p273 = pneg %p133
        %s274 = sand.u32 %s123, 1
        %s275 = scalar_lea.sflag [#allocation4], %s274
        %s276 = sand.u32 %s123, 1
        %s277 = smul.addr %s276, 128
        %s278 = scalar_lea.vmem [#allocation9], %s277
        %s279 = smul.u32 8, %s28
        %s280 = smul.u32 16, %s29
        %s281 = ssub.s32 1, %s279
        %s282 = smul.u32 %s281, 16
        %s283 = smul.u32 8, %s28
        %s284 = smul.u32 16, %s29
        %s285 = ssub.s32 1, %s283
        %s286 = smul.u32 %s285, 16
        %s287 = smul.u32 8, %s28
        %s288 = smul.u32 16, %s29
        %s289 = ssub.s32 1, %s287
        %s290 = smul.u32 %s289, 16
        %s291 = sld [smem:[#allocation2]]
        %s292 = sld [smem:[#allocation2 + $0x1]]
        %v293 = vld [vmem:[%s239] sm:$0xff]
        %v294 = vld [vmem:[%s239 + $0x8] sm:$0xff]
        %v295 = vld [vmem:[%s239 + $0x10] sm:$0xff]
        %v296 = vld [vmem:[%s239 + $0x18] sm:$0xff]
        %v297 = vld [vmem:[%s239 + $0x20] sm:$0xff]
        %v298 = vld [vmem:[%s239 + $0x28] sm:$0xff]
        %v299 = vld [vmem:[%s239 + $0x30] sm:$0xff]
        %v300 = vld [vmem:[%s239 + $0x38] sm:$0xff]
        %v301 = vld [vmem:[%s239 + $0x40] sm:$0xff]
        %v302 = vld [vmem:[%s239 + $0x48] sm:$0xff]
        %v303 = vld [vmem:[%s239 + $0x50] sm:$0xff]
        %v304 = vld [vmem:[%s239 + $0x58] sm:$0xff]
        %v305 = vld [vmem:[%s239 + $0x60] sm:$0xff]
        %v306 = vld [vmem:[%s239 + $0x68] sm:$0xff]
        %v307 = vld [vmem:[%s239 + $0x70] sm:$0xff]
        %v308 = vld [vmem:[%s239 + $0x78] sm:$0xff]
        %v309 = vld [vmem:[%s249] sm:$0xff]
        %v310 = vld [vmem:[%s249 + $0x8] sm:$0xff]
        %v311 = vld [vmem:[%s249 + $0x10] sm:$0xff]
        %v312 = vld [vmem:[%s249 + $0x18] sm:$0xff]
        %v313 = vld [vmem:[%s249 + $0x20] sm:$0xff]
        %v314 = vld [vmem:[%s249 + $0x28] sm:$0xff]
        %v315 = vld [vmem:[%s249 + $0x30] sm:$0xff]
        %v316 = vld [vmem:[%s249 + $0x38] sm:$0xff]
        %v317 = vld [vmem:[%s249 + $0x40] sm:$0xff]
        %v318 = vld [vmem:[%s249 + $0x48] sm:$0xff]
        %v319 = vld [vmem:[%s249 + $0x50] sm:$0xff]
        %v320 = vld [vmem:[%s249 + $0x58] sm:$0xff]
        %v321 = vld [vmem:[%s249 + $0x60] sm:$0xff]
        %v322 = vld [vmem:[%s249 + $0x68] sm:$0xff]
        %v323 = vld [vmem:[%s249 + $0x70] sm:$0xff]
        %v324 = vld [vmem:[%s249 + $0x78] sm:$0xff]
        %v325 = vstv %s291
        %vm326 = vcmp.ge.f32.partialorder %v293, %v325
        %vm327 = vcmp.ge.f32.partialorder %v294, %v325
        %vm328 = vcmp.ge.f32.partialorder %v295, %v325
        %vm329 = vcmp.ge.f32.partialorder %v296, %v325
        %vm330 = vcmp.ge.f32.partialorder %v297, %v325
        %vm331 = vcmp.ge.f32.partialorder %v298, %v325
        %vm332 = vcmp.ge.f32.partialorder %v299, %v325
        %vm333 = vcmp.ge.f32.partialorder %v300, %v325
        %vm334 = vcmp.ge.f32.partialorder %v301, %v325
        %vm335 = vcmp.ge.f32.partialorder %v302, %v325
        %vm336 = vcmp.ge.f32.partialorder %v303, %v325
        %vm337 = vcmp.ge.f32.partialorder %v304, %v325
        %vm338 = vcmp.ge.f32.partialorder %v305, %v325
        %vm339 = vcmp.ge.f32.partialorder %v306, %v325
        %vm340 = vcmp.ge.f32.partialorder %v307, %v325
        %vm341 = vcmp.ge.f32.partialorder %v308, %v325
        %v342 = vstv %s292
        %vm343 = vcmp.le.f32.partialorder %v293, %v342
        %vm344 = vcmp.le.f32.partialorder %v294, %v342
        %vm345 = vcmp.le.f32.partialorder %v295, %v342
        %vm346 = vcmp.le.f32.partialorder %v296, %v342
        %vm347 = vcmp.le.f32.partialorder %v297, %v342
        %vm348 = vcmp.le.f32.partialorder %v298, %v342
        %vm349 = vcmp.le.f32.partialorder %v299, %v342
        %vm350 = vcmp.le.f32.partialorder %v300, %v342
        %vm351 = vcmp.le.f32.partialorder %v301, %v342
        %vm352 = vcmp.le.f32.partialorder %v302, %v342
        %vm353 = vcmp.le.f32.partialorder %v303, %v342
        %vm354 = vcmp.le.f32.partialorder %v304, %v342
        %vm355 = vcmp.le.f32.partialorder %v305, %v342
        %vm356 = vcmp.le.f32.partialorder %v306, %v342
        %vm357 = vcmp.le.f32.partialorder %v307, %v342
        %vm358 = vcmp.le.f32.partialorder %v308, %v342
        %vm359 = vmor %vm326, %vm343
        %vm360 = vmor %vm327, %vm344
        %vm361 = vmor %vm328, %vm345
        %vm362 = vmor %vm329, %vm346
        %vm363 = vmor %vm330, %vm347
        %vm364 = vmor %vm331, %vm348
        %vm365 = vmor %vm332, %vm349
        %vm366 = vmor %vm333, %vm350
        %vm367 = vmor %vm334, %vm351
        %vm368 = vmor %vm335, %vm352
        %vm369 = vmor %vm336, %vm353
        %vm370 = vmor %vm337, %vm354
        %vm371 = vmor %vm338, %vm355
        %vm372 = vmor %vm339, %vm356
        %vm373 = vmor %vm340, %vm357
        %vm374 = vmor %vm341, %vm358
        %v375 = vsel %vm359, 0.0, %v309
        %v376 = vsel %vm360, 0.0, %v310
        %v377 = vsel %vm361, 0.0, %v311
        %v378 = vsel %vm362, 0.0, %v312
        %v379 = vsel %vm363, 0.0, %v313
        %v380 = vsel %vm364, 0.0, %v314
        %v381 = vsel %vm365, 0.0, %v315
        %v382 = vsel %vm366, 0.0, %v316
        %v383 = vsel %vm367, 0.0, %v317
        %v384 = vsel %vm368, 0.0, %v318
        %v385 = vsel %vm369, 0.0, %v319
        %v386 = vsel %vm370, 0.0, %v320
        %v387 = vsel %vm371, 0.0, %v321
        %v388 = vsel %vm372, 0.0, %v322
        %v389 = vsel %vm373, 0.0, %v323
        %v390 = vsel %vm374, 0.0, %v324
        %391 = vst [vmem:[%s278] sm:$0xff] %v375
        %392 = vst [vmem:[%s278 + $0x8] sm:$0xff] %v376
        %393 = vst [vmem:[%s278 + $0x10] sm:$0xff] %v377
        %394 = vst [vmem:[%s278 + $0x18] sm:$0xff] %v378
        %395 = vst [vmem:[%s278 + $0x20] sm:$0xff] %v379
        %396 = vst [vmem:[%s278 + $0x28] sm:$0xff] %v380
        %397 = vst [vmem:[%s278 + $0x30] sm:$0xff] %v381
        %398 = vst [vmem:[%s278 + $0x38] sm:$0xff] %v382
        %399 = vst [vmem:[%s278 + $0x40] sm:$0xff] %v383
        %400 = vst [vmem:[%s278 + $0x48] sm:$0xff] %v384
        %401 = vst [vmem:[%s278 + $0x50] sm:$0xff] %v385
        %402 = vst [vmem:[%s278 + $0x58] sm:$0xff] %v386
        %403 = vst [vmem:[%s278 + $0x60] sm:$0xff] %v387
        %404 = vst [vmem:[%s278 + $0x68] sm:$0xff] %v388
        %405 = vst [vmem:[%s278 + $0x70] sm:$0xff] %v389
        %406 = vst [vmem:[%s278 + $0x78] sm:$0xff] %v390
        %s407 = sand.u32 %s123, 1
        %s408 = scalar_lea.sflag [#allocation4], %s407
        %s409 = sand.u32 %s123, 1
        %s410 = smul.addr %s409, 128
        %s411 = scalar_lea.vmem [#allocation9], %s410
        // Predicated region
        $region45: #{tpu_custom_call.1} parent=31 // pred_check
          %p412 = pneg %p133
        $region46: #{tpu_custom_call.1} parent=31 // pred_check_branch
          %414 = sbr.rel (%p412) target = $region48
        $region47: #{tpu_custom_call.1} parent=31 // pred_region
          %s415 = smul.u32 8, %s28
          %s416 = smul.u32 16, %s29
          %s417 = ssub.s32 1, %s415
          %s418 = smul.u32 %s417, 16
          %s419 = ssub.s32 128, %s418
          %s420 = sshll.u32 %s419, 4
          %421 = vsyncadd %s408, %s420
          %p422 = scmp.ne.s32.totalorder 0, %s418
          %s423 = smul.addr %s415, 32
          %s424 = sadd.s32 %s416, %s423
          %s425 = scalar_lea.hbm %s3, %s424
          %s426 = smul.u32 16, %s417
          %s427 = sshll.u32 %s411, 4
          %s428 = int_to_ptr.vmem [resolvable:$true] %s427
          %s429 = sshll.u32 %s425, 4
          %s430 = int_to_ptr.hbm [resolvable:$true] %s429
          %s431 = sshll.u32 %s426, 4
          %435 = dma.vmem_to_hbm [thread:$0]  (%p422), %s428, %s431, %s430, %s408, 256, 512, 16
        $region48: #{tpu_custom_call.1} parent=31 // pred_fallthru
          _
      $region32: #{tpu_custom_call.1} parent=5 // pred_fallthru
        _
      %p436 = scmp.le.s32.totalorder 2, %s19
      // Predicated region
      $region49: #{tpu_custom_call.1} parent=5 // pred_check
        %p437 = pneg %p436
      $region50: #{tpu_custom_call.1} parent=5 // pred_check_branch
        %439 = sbr.rel (%p437) target = $region52
      $region51: #{tpu_custom_call.1} parent=5 // pred_region
        %s440 = ssub.s32 %s19, 2
        // Predicated region
        $region53: #{tpu_custom_call.1} parent=51 // pred_check
          %p441 = pneg %p139
        $region54: #{tpu_custom_call.1} parent=51 // pred_check_branch
          %443 = sbr.rel (%p441) target = $region56
        $region55: #{tpu_custom_call.1} parent=51 // pred_region
          %s444 = sand.u32 %s124, 1
          %s445 = scalar_lea.sflag [#allocation4], %s444
          %s446 = sand.u32 %s124, 1
          %s447 = smul.addr %s446, 128
          %s448 = scalar_lea.vmem [#allocation9], %s447
          %450 = dma.done %s445, 2048
        $region56: #{tpu_custom_call.1} parent=51 // pred_fallthru
          _
      $region52: #{tpu_custom_call.1} parent=5 // pred_fallthru
        _
    $region6: #{tpu_custom_call.1} parent=1 // loop_footer
      %s23 = sadd.s32 1, %s19
    $region7: #{tpu_custom_call.1} parent=1 // loop_footer_branch
      %18 = sbr.rel target = $region3
    $region8: #{tpu_custom_call.1} parent=1 // loop_exit
      _
    %451 = vsyncpa [#allocation3], 1
    %s452 = scalar_lea.sflag [#allocation3], 1
    %453 = vsyncpa %s452, 1
    %454 = vsyncpa [#allocation8], 1
    %s455 = scalar_lea.sflag [#allocation8], 1
    %456 = vsyncpa %s455, 1
    %457 = vsyncpa [#allocation4], 1
    %s458 = scalar_lea.sflag [#allocation4], 1
    %459 = vsyncpa %s458, 1
    %460 = vsyncpa [#allocation5], 1
    %s461 = scalar_lea.sflag [#allocation5], 1
    %462 = vsyncpa %s461, 1

</llo_original>
